<compile_context>
chip_gen: v7x
topology: tpu7x:2x2x1
jax: 0.10.0
libtpu: 0.0.40
codegen_flags: <defaults>
</compile_context>

<pallas_src>
import jax
import jax.numpy as jnp
from jax.experimental import pallas as pl
from jax.experimental.pallas import tpu as pltpu


def multi_gat_fused_kernel(x_art_ref, x_obj_ref, mask_ref,
                           w_all_ref, wd_a_ref, sel_bias_ref, out_ref):
    """All N_obj private GATConv encoders fused in one invocation."""
    n_obj = mask_ref.shape[0]
    noh = sel_bias_ref.shape[-1]                      # N_obj * H

    # (1) ONE packed MXU matmul: every encoder's source transform AND the
    #     att_src-folded source attention logits.
    fused = jnp.dot(x_art_ref[...], w_all_ref[...],
                    preferred_element_type=jnp.float32)        # [N_art, NOH + N_obj]
    h_src = fused[:, :noh]                                     # [N_art, NOH]
    s_src = jnp.transpose(fused[:, noh:])                      # [N_obj, N_art]

    # (2) Destination attention contribution (att_dst folded into wd_a) — pure VPU.
    s_dst = jnp.sum(x_obj_ref[...] * wd_a_ref[...],
                    axis=-1, keepdims=True)                    # [N_obj, 1]

    # (3) LeakyReLU(0.2) + masked softmax over source neighbours (lane-axis).
    logits = s_src + s_dst                                     # [N_obj, N_art]
    logits = jnp.where(logits > 0, logits, 0.2 * logits)
    neg = jnp.finfo(logits.dtype).min                          # dtype-aware sentinel
    logits = jnp.where(mask_ref[...] > 0, logits, neg)
    m = jnp.max(logits, axis=-1, keepdims=True)
    p = jnp.exp(logits - m)                                    # masked entries -> 0
    # Exact divide: denom >= 1 (row max contributes exp(0)=1); fully-masked rows
    # degrade to uniform attention, matching the reference/PyG softmax.
    alpha = p / jnp.sum(p, axis=-1, keepdims=True)             # [N_obj, N_art]
    # TODO(synk): GATConv attention dropout (0.2) is a train-time op; inference
    # semantics (identity) implemented here.

    # (4) Aggregate all encoders with one MXU pass; keep the block-diagonal part
    #     via the constant sel indicator; add bias; fused relu; lane-dense store.
    agg = jnp.dot(alpha, h_src, preferred_element_type=jnp.float32)   # [N_obj, NOH]
    sel = sel_bias_ref[:n_obj, :]                                     # [N_obj, NOH]
    bias = sel_bias_ref[n_obj:, :]                                    # [1, NOH]
    out = jnp.sum(agg * sel, axis=0, keepdims=True) + bias            # [1, NOH]
    out_ref[...] = jnp.maximum(out, 0.0)


def pack_params(w_src, w_dst, att_src, att_dst, bias):
    """One-time host-side, parameter-only packing (layout + constant folding).

    Call once at parameter-load time and close over the results — nothing here
    depends on the per-forward inputs.
    """
    n_obj, f_in, h = w_src.shape
    noh = n_obj * h
    # Packed source-transform weights, lane-dense over encoders.
    w_src_pack = jnp.transpose(w_src, (1, 0, 2)).reshape(f_in, noh)       # [F_in, NOH]
    # att_src folded into W_src: column e is W_src[e] @ att_src[e].
    wsa_pack = jnp.einsum('efh,eh->fe', w_src, att_src)                   # [F_in, N_obj]
    w_all = jnp.concatenate([w_src_pack, wsa_pack], axis=1)               # [F_in, NOH+N_obj]
    # att_dst folded into W_dst.
    wd_a = jnp.einsum('efh,eh->ef', w_dst, att_dst)                       # [N_obj, F_in]
    # Block-diagonal selection indicator + bias, packed into one operand.
    row = jnp.arange(n_obj)[:, None]
    col = jnp.arange(noh)[None, :]
    sel = (col // h == row).astype(jnp.float32)                           # [N_obj, NOH]
    sel_bias = jnp.concatenate([sel, bias.reshape(1, noh)], axis=0)       # [N_obj+1, NOH]
    return w_all, wd_a, sel_bias


def multi_gnn_encoder_forward(x_art, x_obj, mask, w_all, wd_a, sel_bias):
    """Fused forward. Returns relu(flattened per-encoder GAT rows), shape [N_obj*H]."""
    n_art, f_in = x_art.shape
    n_obj = x_obj.shape[0]
    noh = sel_bias.shape[-1]

    out = pl.pallas_call(
        multi_gat_fused_kernel,
        out_shape=jax.ShapeDtypeStruct((1, noh), jnp.float32),
        grid=(1,),
        in_specs=[
            pl.BlockSpec((n_art, f_in), lambda i: (0, 0)),        # x_art
            pl.BlockSpec((n_obj, f_in), lambda i: (0, 0)),        # x_obj
            pl.BlockSpec((n_obj, n_art), lambda i: (0, 0)),       # mask (lane-major src)
            pl.BlockSpec((f_in, noh + n_obj), lambda i: (0, 0)),  # [W_src_pack | W_src@att_src]
            pl.BlockSpec((n_obj, f_in), lambda i: (0, 0)),        # att_dst-folded W_dst
            pl.BlockSpec((n_obj + 1, noh), lambda i: (0, 0)),     # [sel ; bias]
        ],
        out_specs=pl.BlockSpec((1, noh), lambda i: (0, 0)),
        compiler_params=pltpu.CompilerParams(dimension_semantics=("arbitrary",)),
    )(x_art, x_obj, mask, w_all, wd_a, sel_bias)
    # TODO(synk): for batched graphs, stack (x_art, x_obj, mask) along a leading
    # "parallel" grid axis (2-TC split on v7x, overhead amortization on v5e/v6e);
    # for large-scale F_in/NOH, stream w_all in bf16 and group encoders per grid
    # step (halve the group size for v7x's 64 MiB VMEM vs v5e/v6e).
    return out.reshape(-1)


def ref_forward(x_art, x_obj, mask, w_src, w_dst, att_src, att_dst, bias):
    """Pure-JAX reference of the module semantics (per-encoder row extraction)."""
    rows = []
    for e in range(x_obj.shape[0]):
        h_src = x_art @ w_src[e]                       # [N_art, H]
        h_dst = x_obj[e] @ w_dst[e]                    # [H]
        a_s = h_src @ att_src[e]                       # [N_art]
        a_d = h_dst @ att_dst[e]                       # scalar
        logits = a_s + a_d
        logits = jnp.where(logits > 0, logits, 0.2 * logits)
        logits = jnp.where(mask[e] > 0, logits, -1e30)
        alpha = jax.nn.softmax(logits)
        out = alpha @ h_src + bias[e]
        rows.append(jnp.maximum(out, 0.0))
    return jnp.concatenate(rows)


if __name__ == "__main__":
    N_art, N_obj, F_in, H, E = 16, 8, 32, 32, 40

    key = jax.random.PRNGKey(0)
    ks = jax.random.split(key, 9)
    x_art = jax.random.normal(ks[0], (N_art, F_in), jnp.float32)
    x_obj = jax.random.normal(ks[1], (N_obj, F_in), jnp.float32)
    src = jax.random.randint(ks[2], (E,), 0, N_art)
    dst = jax.random.randint(ks[3], (E,), 0, N_obj)

    # Dense adjacency (dst, src) + GATConv self-loops for i < min(N_art, N_obj).
    mask = jnp.zeros((N_obj, N_art), jnp.float32).at[dst, src].set(1.0)
    loop = jnp.arange(min(N_art, N_obj))
    mask = mask.at[loop, loop].set(1.0)

    # Deterministic per-encoder GATConv parameters (lin_src/lin_dst bias=False).
    w_src = 0.1 * jax.random.normal(ks[4], (N_obj, F_in, H), jnp.float32)
    w_dst = 0.1 * jax.random.normal(ks[5], (N_obj, F_in, H), jnp.float32)
    att_src = 0.1 * jax.random.normal(ks[6], (N_obj, H), jnp.float32)
    att_dst = 0.1 * jax.random.normal(ks[7], (N_obj, H), jnp.float32)
    bias = 0.1 * jax.random.normal(ks[8], (N_obj, H), jnp.float32)

    # One-time parameter packing (hoisted out of the per-forward path).
    w_all, wd_a, sel_bias = pack_params(w_src, w_dst, att_src, att_dst, bias)
    w_all, wd_a, sel_bias = jax.block_until_ready((w_all, wd_a, sel_bias))

    out = multi_gnn_encoder_forward(x_art, x_obj, mask, w_all, wd_a, sel_bias)
    out = jax.block_until_ready(out)

    ref = ref_forward(x_art, x_obj, mask, w_src, w_dst, att_src, att_dst, bias)
    assert out.shape == (N_obj * H,)
    # Exact softmax divide in-kernel; remaining delta is matmul re-association only.
    assert jnp.allclose(out, ref, atol=1e-4, rtol=1e-4), float(jnp.max(jnp.abs(out - ref)))
    print("KERNEL_OK")
</pallas_src>

<mosaic_0001>
module attributes {stable_mosaic.version = 11 : i64} {
  func.func @multi_gat_fused_kernel(%arg0: i32, %arg1: memref<16x32xf32, #tpu.memory_space<vmem>>, %arg2: memref<8x32xf32, #tpu.memory_space<vmem>>, %arg3: memref<8x16xf32, #tpu.memory_space<vmem>>, %arg4: memref<32x264xf32, #tpu.memory_space<vmem>>, %arg5: memref<8x32xf32, #tpu.memory_space<vmem>>, %arg6: memref<9x256xf32, #tpu.memory_space<vmem>>, %arg7: memref<1x256xf32, #tpu.memory_space<vmem>>) attributes {dimension_semantics = [#tpu.dimension_semantics<arbitrary>], iteration_bounds = array<i64: 1>, scalar_prefetch = 0 : i64, scratch_operands = 0 : i64, tpu.core_type = #tpu.core_type<tc>, window_params = [{pipeline_mode = #tpu.pipeline_mode<synchronous>, transform_indices = @transform_0, window_bounds = array<i64: 16, 32>}, {pipeline_mode = #tpu.pipeline_mode<synchronous>, transform_indices = @transform_1, window_bounds = array<i64: 8, 32>}, {pipeline_mode = #tpu.pipeline_mode<synchronous>, transform_indices = @transform_2, window_bounds = array<i64: 8, 16>}, {pipeline_mode = #tpu.pipeline_mode<synchronous>, transform_indices = @transform_3, window_bounds = array<i64: 32, 264>}, {pipeline_mode = #tpu.pipeline_mode<synchronous>, transform_indices = @transform_4, window_bounds = array<i64: 8, 32>}, {pipeline_mode = #tpu.pipeline_mode<synchronous>, transform_indices = @transform_5, window_bounds = array<i64: 9, 256>}, {pipeline_mode = #tpu.pipeline_mode<synchronous>, transform_indices = @transform_6, window_bounds = array<i64: 1, 256>}]} {
    %c0 = arith.constant 0 : index
    %c0_0 = arith.constant 0 : index
    %0 = vector.load %arg1[%c0, %c0_0] : memref<16x32xf32, #tpu.memory_space<vmem>>, vector<16x32xf32>
    %c0_1 = arith.constant 0 : index
    %c0_2 = arith.constant 0 : index
    %1 = vector.load %arg4[%c0_1, %c0_2] : memref<32x264xf32, #tpu.memory_space<vmem>>, vector<32x264xf32>
    %cst = arith.constant dense<0.000000e+00> : vector<16x264xf32>
    %2 = tpu.matmul %0, %1, %cst {dimension_numbers = #tpu.dot_dimension_numbers<[1], [0], [0], [1], [0, 0, 1, 1], [], []>} : vector<16x32xf32>, vector<32x264xf32>, vector<16x264xf32> -> vector<16x264xf32>
    %3 = vector.extract_strided_slice %2 {offsets = [0, 0], sizes = [16, 256], strides = [1, 1]} : vector<16x264xf32> to vector<16x256xf32>
    %4 = vector.extract_strided_slice %2 {offsets = [0, 256], sizes = [16, 8], strides = [1, 1]} : vector<16x264xf32> to vector<16x8xf32>
    %5 = tpu.transpose %4, [1, 0] : vector<16x8xf32> -> vector<8x16xf32>
    %c0_3 = arith.constant 0 : index
    %c0_4 = arith.constant 0 : index
    %6 = vector.load %arg2[%c0_3, %c0_4] : memref<8x32xf32, #tpu.memory_space<vmem>>, vector<8x32xf32>
    %c0_5 = arith.constant 0 : index
    %c0_6 = arith.constant 0 : index
    %7 = vector.load %arg5[%c0_5, %c0_6] : memref<8x32xf32, #tpu.memory_space<vmem>>, vector<8x32xf32>
    %8 = arith.mulf %6, %7 : vector<8x32xf32>
    %cst_7 = arith.constant dense<0.000000e+00> : vector<8xf32>
    %9 = vector.multi_reduction <add>, %8, %cst_7 [1] : vector<8x32xf32> to vector<8xf32>
    %10 = vector.shape_cast %9 : vector<8xf32> to vector<8x1xf32>
    %11 = vector.broadcast %10 : vector<8x1xf32> to vector<8x16xf32>
    %12 = arith.addf %5, %11 : vector<8x16xf32>
    %cst_8 = arith.constant 0.000000e+00 : f32
    %13 = vector.broadcast %cst_8 : f32 to vector<8x16xf32>
    %14 = arith.cmpf ogt, %12, %13 : vector<8x16xf32>
    %cst_9 = arith.constant 2.000000e-01 : f32
    %15 = vector.broadcast %cst_9 : f32 to vector<8x16xf32>
    %16 = arith.mulf %15, %12 : vector<8x16xf32>
    %17 = arith.select %14, %12, %16 : vector<8x16xi1>, vector<8x16xf32>
    %c0_10 = arith.constant 0 : index
    %c0_11 = arith.constant 0 : index
    %18 = vector.load %arg3[%c0_10, %c0_11] : memref<8x16xf32, #tpu.memory_space<vmem>>, vector<8x16xf32>
    %cst_12 = arith.constant 0.000000e+00 : f32
    %19 = vector.broadcast %cst_12 : f32 to vector<8x16xf32>
    %20 = arith.cmpf ogt, %18, %19 : vector<8x16xf32>
    %cst_13 = arith.constant -3.40282347E+38 : f32
    %21 = vector.broadcast %cst_13 : f32 to vector<8x16xf32>
    %22 = arith.select %20, %17, %21 : vector<8x16xi1>, vector<8x16xf32>
    %cst_14 = arith.constant dense<0xFF800000> : vector<8xf32>
    %23 = vector.multi_reduction <maximumf>, %22, %cst_14 [1] : vector<8x16xf32> to vector<8xf32>
    %24 = vector.shape_cast %23 : vector<8xf32> to vector<8x1xf32>
    %25 = vector.broadcast %24 : vector<8x1xf32> to vector<8x16xf32>
    %26 = arith.subf %22, %25 : vector<8x16xf32>
    %27 = math.exp %26 : vector<8x16xf32>
    %cst_15 = arith.constant dense<0.000000e+00> : vector<8xf32>
    %28 = vector.multi_reduction <add>, %27, %cst_15 [1] : vector<8x16xf32> to vector<8xf32>
    %29 = vector.shape_cast %28 : vector<8xf32> to vector<8x1xf32>
    %30 = vector.broadcast %29 : vector<8x1xf32> to vector<8x16xf32>
    %31 = arith.divf %27, %30 : vector<8x16xf32>
    %cst_16 = arith.constant dense<0.000000e+00> : vector<8x256xf32>
    %32 = tpu.matmul %31, %3, %cst_16 {dimension_numbers = #tpu.dot_dimension_numbers<[1], [0], [0], [1], [0, 0, 1, 1], [], []>} : vector<8x16xf32>, vector<16x256xf32>, vector<8x256xf32> -> vector<8x256xf32>
    %c0_17 = arith.constant 0 : index
    %c0_18 = arith.constant 0 : index
    %33 = vector.load %arg6[%c0_17, %c0_18] : memref<9x256xf32, #tpu.memory_space<vmem>>, vector<8x256xf32>
    %c8 = arith.constant 8 : index
    %c0_19 = arith.constant 0 : index
    %34 = vector.load %arg6[%c8, %c0_19] : memref<9x256xf32, #tpu.memory_space<vmem>>, vector<1x256xf32>
    %35 = arith.mulf %32, %33 : vector<8x256xf32>
    %cst_20 = arith.constant dense<0.000000e+00> : vector<256xf32>
    %36 = vector.multi_reduction <add>, %35, %cst_20 [0] : vector<8x256xf32> to vector<256xf32>
    %37 = vector.shape_cast %36 : vector<256xf32> to vector<1x256xf32>
    %38 = arith.addf %37, %34 : vector<1x256xf32>
    %cst_21 = arith.constant 0.000000e+00 : f32
    %39 = vector.broadcast %cst_21 : f32 to vector<1x256xf32>
    %40 = arith.maximumf %38, %39 : vector<1x256xf32>
    %c0_22 = arith.constant 0 : index
    %c0_23 = arith.constant 0 : index
    %41 = vector.load %arg7[%c0_22, %c0_23] : memref<1x256xf32, #tpu.memory_space<vmem>>, vector<1x256xf32>
    tpu.vector_store %arg7[%c0_22, %c0_23], %40 {strides = array<i32>} : memref<1x256xf32, #tpu.memory_space<vmem>>, vector<1x256xf32>,
    return
  }
  func.func @transform_0(%arg0: i32) -> (i32, i32) {
    %c0_i32 = arith.constant 0 : i32
    %c0_i32_0 = arith.constant 0 : i32
    %c0_i32_1 = arith.constant 0 : i32
    return %c0_i32, %c0_i32_0 : i32, i32
  }
  func.func @transform_1(%arg0: i32) -> (i32, i32) {
    %c0_i32 = arith.constant 0 : i32
    %c0_i32_0 = arith.constant 0 : i32
    %c0_i32_1 = arith.constant 0 : i32
    return %c0_i32, %c0_i32_0 : i32, i32
  }
  func.func @transform_2(%arg0: i32) -> (i32, i32) {
    %c0_i32 = arith.constant 0 : i32
    %c0_i32_0 = arith.constant 0 : i32
    %c0_i32_1 = arith.constant 0 : i32
    return %c0_i32, %c0_i32_0 : i32, i32
  }
  func.func @transform_3(%arg0: i32) -> (i32, i32) {
    %c0_i32 = arith.constant 0 : i32
    %c0_i32_0 = arith.constant 0 : i32
    %c0_i32_1 = arith.constant 0 : i32
    return %c0_i32, %c0_i32_0 : i32, i32
  }
  func.func @transform_4(%arg0: i32) -> (i32, i32) {
    %c0_i32 = arith.constant 0 : i32
    %c0_i32_0 = arith.constant 0 : i32
    %c0_i32_1 = arith.constant 0 : i32
    return %c0_i32, %c0_i32_0 : i32, i32
  }
  func.func @transform_5(%arg0: i32) -> (i32, i32) {
    %c0_i32 = arith.constant 0 : i32
    %c0_i32_0 = arith.constant 0 : i32
    %c0_i32_1 = arith.constant 0 : i32
    return %c0_i32, %c0_i32_0 : i32, i32
  }
  func.func @transform_6(%arg0: i32) -> (i32, i32) {
    %c0_i32 = arith.constant 0 : i32
    %c0_i32_0 = arith.constant 0 : i32
    %c0_i32_1 = arith.constant 0 : i32
    return %c0_i32, %c0_i32_0 : i32, i32
  }
}

</mosaic_0001>

<llo_original>
// kernel: tpu_custom_call.1
$region0: #{tpu_custom_call.1}
  #allocation0 [shape = 'u32[]', space=smem, size = 0x4, offset = 0x4, fixed_abs, tag = 'smem constant byte address 0x4 - core index']
  #allocation1 [shape = 'u32[144,128]{1,0:T(1,128)}', space=vmem, size = 0x12000, scoped, tag = 'internal scratch']
  %s0 = inlined_call_operand.hbm [shape: f32[16,32], index: 0, kind: input, shape index: {}]
  %s1 = inlined_call_operand.hbm [shape: f32[8,32], index: 1, kind: input, shape index: {}]
  %s2 = inlined_call_operand.hbm [shape: f32[8,16], index: 2, kind: input, shape index: {}]
  %s3 = inlined_call_operand.hbm [shape: f32[32,264], index: 3, kind: input, shape index: {}]
  %s4 = inlined_call_operand.vmem [shape: f32[8,32], index: 4, kind: input, shape index: {}]
  %s5 = inlined_call_operand.hbm [shape: f32[9,256], index: 5, kind: input, shape index: {}]
  %s6 = inlined_call_operand.hbm [shape: f32[1,256], index: 6, kind: output, shape index: {}]
  %s7 = sld [smem:[#allocation0]]
  $region54: #{tpu_custom_call.1} parent=0
    _
  %s9 = ssub.s32 1, %s7
  %s10 = scalar_select 0, %s9, %s7
  $region1: #{tpu_custom_call.1} parent=0
    #allocation2 [shape = 'u8[8192]{0}', space=vmem, size = 0x2000, scoped, tag = 'input window, operand 0, single buffered']
    #allocation3 [shape = 's32[1]{0}', space=sflag, size = 0x4, scoped, tag = 'scoped memory for tpu_custom_call.1']
    #allocation4 [shape = 's32[1]{0}', space=sflag, size = 0x4, scoped, tag = 'scoped memory for tpu_custom_call.1']
    #allocation5 [shape = 'u8[4096]{0}', space=vmem, size = 0x1000, scoped, tag = 'input window, operand 1, single buffered']
    #allocation6 [shape = 's32[1]{0}', space=sflag, size = 0x4, scoped, tag = 'scoped memory for tpu_custom_call.1']
    #allocation7 [shape = 'u8[4096]{0}', space=vmem, size = 0x1000, scoped, tag = 'input window, operand 2, single buffered']
    #allocation8 [shape = 'u8[49152]{0}', space=vmem, size = 0xc000, scoped, tag = 'input window, operand 3, single buffered']
    #allocation9 [shape = 's32[1]{0}', space=sflag, size = 0x4, scoped, tag = 'scoped memory for tpu_custom_call.1']
    #allocation10 [shape = 'u8[16384]{0}', space=vmem, size = 0x4000, scoped, tag = 'input window, operand 5, single buffered']
    #allocation11 [shape = 'u8[1024]{0}', space=vmem, size = 0x400, scoped, tag = 'output window, operand 0, single buffered']
    %11 = vsyncpa [#allocation3], 0
    %12 = vsyncpa [#allocation6], 0
    %13 = vsyncpa [#allocation9], 0
    %14 = vsyncpa [#allocation4], 0
    // Predicated region
    $region2: #{tpu_custom_call.1} parent=1 // pred_check
      _
    $region3: #{tpu_custom_call.1} parent=1 // pred_check_branch
      %16 = sbr.rel (0) target = $region5
    $region4: #{tpu_custom_call.1} parent=1 // pred_region
      %s18 = ssub.s32 256, 256
      %19 = vsyncadd [#allocation3], %s18
      %s20 = sshll.u32 [#allocation2], 4
      %s21 = int_to_ptr.vmem [resolvable:$true] %s20
      %26 = dma.hbm_to_vmem [thread:$0]  %s0, 256, %s21, [#allocation3], 128, 128, 8
    $region5: #{tpu_custom_call.1} parent=1 // pred_fallthru
      _
    // Predicated region
    $region6: #{tpu_custom_call.1} parent=1 // pred_check
      _
    $region7: #{tpu_custom_call.1} parent=1 // pred_check_branch
      %28 = sbr.rel (0) target = $region9
    $region8: #{tpu_custom_call.1} parent=1 // pred_region
      %s30 = ssub.s32 128, 128
      %31 = vsyncadd [#allocation6], %s30
      %s33 = sshll.u32 [#allocation5], 4
      %s34 = int_to_ptr.vmem [resolvable:$true] %s33
      %36 = dma.hbm_to_vmem [thread:$0]  %s1, 128, %s34, [#allocation6]
    $region9: #{tpu_custom_call.1} parent=1 // pred_fallthru
      _
    // Predicated region
    $region10: #{tpu_custom_call.1} parent=1 // pred_check
      _
    $region11: #{tpu_custom_call.1} parent=1 // pred_check_branch
      %38 = sbr.rel (0) target = $region13
    $region12: #{tpu_custom_call.1} parent=1 // pred_region
      %s40 = ssub.s32 128, 128
      %41 = vsyncadd [#allocation6], %s40
      %s43 = sshll.u32 [#allocation7], 4
      %s44 = int_to_ptr.vmem [resolvable:$true] %s43
      %46 = dma.hbm_to_vmem [thread:$0]  %s2, 128, %s44, [#allocation6]
    $region13: #{tpu_custom_call.1} parent=1 // pred_fallthru
      _
    // Predicated region
    $region14: #{tpu_custom_call.1} parent=1 // pred_check
      _
    $region15: #{tpu_custom_call.1} parent=1 // pred_check_branch
      %48 = sbr.rel (0) target = $region17
    $region16: #{tpu_custom_call.1} parent=1 // pred_region
      %s50 = ssub.s32 1536, 1536
      %51 = vsyncadd [#allocation9], %s50
      %s52 = sshll.u32 [#allocation8], 4
      %s53 = int_to_ptr.vmem [resolvable:$true] %s52
      %58 = dma.hbm_to_vmem [thread:$0]  %s3, 1536, %s53, [#allocation9], 384, 384, 24
    $region17: #{tpu_custom_call.1} parent=1 // pred_fallthru
      _
    // Predicated region
    $region18: #{tpu_custom_call.1} parent=1 // pred_check
      _
    $region19: #{tpu_custom_call.1} parent=1 // pred_check_branch
      %60 = sbr.rel (0) target = $region21
    $region20: #{tpu_custom_call.1} parent=1 // pred_region
      _
    $region21: #{tpu_custom_call.1} parent=1 // pred_fallthru
      _
    // Predicated region
    $region22: #{tpu_custom_call.1} parent=1 // pred_check
      _
    $region23: #{tpu_custom_call.1} parent=1 // pred_check_branch
      %62 = sbr.rel (0) target = $region25
    $region24: #{tpu_custom_call.1} parent=1 // pred_region
      %s64 = ssub.s32 512, 512
      %65 = vsyncadd [#allocation9], %s64
      %s66 = sshll.u32 [#allocation10], 4
      %s67 = int_to_ptr.vmem [resolvable:$true] %s66
      %72 = dma.hbm_to_vmem [thread:$0]  %s5, 512, %s67, [#allocation9], 256, 256, 16
    $region25: #{tpu_custom_call.1} parent=1 // pred_fallthru
      _
    // Predicated region
    $region26: #{tpu_custom_call.1} parent=1 // pred_check
      _
    $region27: #{tpu_custom_call.1} parent=1 // pred_check_branch
      %74 = sbr.rel (0) target = $region29
    $region28: #{tpu_custom_call.1} parent=1 // pred_region
      %75 = dma.done [#allocation3], 256
    $region29: #{tpu_custom_call.1} parent=1 // pred_fallthru
      _
    // Predicated region
    $region30: #{tpu_custom_call.1} parent=1 // pred_check
      _
    $region31: #{tpu_custom_call.1} parent=1 // pred_check_branch
      %77 = sbr.rel (0) target = $region33
    $region32: #{tpu_custom_call.1} parent=1 // pred_region
      %78 = dma.done [#allocation6], 128
    $region33: #{tpu_custom_call.1} parent=1 // pred_fallthru
      _
    // Predicated region
    $region34: #{tpu_custom_call.1} parent=1 // pred_check
      _
    $region35: #{tpu_custom_call.1} parent=1 // pred_check_branch
      %80 = sbr.rel (0) target = $region37
    $region36: #{tpu_custom_call.1} parent=1 // pred_region
      %81 = dma.done [#allocation6], 128
    $region37: #{tpu_custom_call.1} parent=1 // pred_fallthru
      _
    // Predicated region
    $region38: #{tpu_custom_call.1} parent=1 // pred_check
      _
    $region39: #{tpu_custom_call.1} parent=1 // pred_check_branch
      %83 = sbr.rel (0) target = $region41
    $region40: #{tpu_custom_call.1} parent=1 // pred_region
      %84 = dma.done [#allocation9], 1536
    $region41: #{tpu_custom_call.1} parent=1 // pred_fallthru
      _
    // Predicated region
    $region42: #{tpu_custom_call.1} parent=1 // pred_check
      _
    $region43: #{tpu_custom_call.1} parent=1 // pred_check_branch
      %86 = sbr.rel (0) target = $region45
    $region44: #{tpu_custom_call.1} parent=1 // pred_region
      %87 = dma.done [#allocation9], 512
    $region45: #{tpu_custom_call.1} parent=1 // pred_fallthru
      _
    %v88 = vld [vmem:[#allocation2] sm:$0xff]
    %v89 = vld [vmem:[#allocation2 + $0x8] sm:$0xff]
    %v90 = vld [vmem:[#allocation8] sm:$0xff]
    %v91 = vld [vmem:[#allocation8 + $0x8] sm:$0xff]
    %v92 = vld [vmem:[#allocation8 + $0x10] sm:$0xff]
    %v93 = vld [vmem:[#allocation8 + $0x18] sm:$0xff]
    %v94 = vld [vmem:[#allocation8 + $0x20] sm:$0xff]
    %v95 = vld [vmem:[#allocation8 + $0x28] sm:$0xff]
    %v96 = vld [vmem:[#allocation8 + $0x30] sm:$0xff]
    %v97 = vld [vmem:[#allocation8 + $0x38] sm:$0xff]
    %v98 = vld [vmem:[#allocation8 + $0x40] sm:$0xff]
    %v99 = vld [vmem:[#allocation8 + $0x48] sm:$0xff]
    %v100 = vld [vmem:[#allocation8 + $0x50] sm:$0xff]
    %v101 = vld [vmem:[#allocation8 + $0x58] sm:$0xff]
    %vm102 = vcmask 261120
    %v104 = vsel %vm102, %v88, 0
    %v107 = vsel %vm102, %v89, 0
    %109 = vmatprep.subr.mxu0 %v91
    %110 = vmatpush1.msra.mxu0 %v90
    %111 = vmatprep.subr.mxu0 %v94
    %112 = vmatpush1.msra.mxu0 %v93
    %113 = vmatprep.subr.mxu0 %v97
    %114 = vmatpush1.msra.mxu0 %v96
    %115 = vmatprep.subr.mxu0 %v100
    %116 = vmatpush1.msra.mxu0 %v99
    %117 = vmatprep.subr.mxu0 0.0
    %118 = vmatpush1.msra.mxu0 0.0
    %119 = vmatprep.subr.mxu0 0.0
    %120 = vmatpush1.msra.mxu0 0.0
    %121 = vmatprep.subr.mxu0 0.0
    %122 = vmatpush1.msra.mxu0 0.0
    %123 = vmatprep.subr.mxu0 0.0
    %124 = vmatpush1.msra.mxu0 0.0
    %125 = vmatprep.subr.mxu0 0.0
    %126 = vmatpush1.msra.mxu0 0.0
    %127 = vmatprep.subr.mxu0 0.0
    %128 = vmatpush1.msra.mxu0 0.0
    %129 = vmatprep.subr.mxu0 0.0
    %130 = vmatpush1.msra.mxu0 0.0
    %131 = vmatprep.subr.mxu0 0.0
    %132 = vmatpush1.msra.mxu0 0.0
    %133 = vmatprep.subr.mxu0 0.0
    %134 = vmatpush1.msra.mxu0 0.0
    %135 = vmatprep.subr.mxu0 0.0
    %136 = vmatpush1.msra.mxu0 0.0
    %137 = vmatprep.subr.mxu0 0.0
    %138 = vmatpush1.msra.mxu0 0.0
    %139 = vmatprep.subr.mxu0 0.0
    %140 = vmatpush1.msra.mxu0 0.0
    %141 = vmatprep.subr.mxu0 0.0
    %142 = vmatpush1.msra.mxu0 0.0
    %143 = vmatprep.subr.mxu0 0.0
    %144 = vmatpush1.msra.mxu0 0.0
    %145 = vmatprep.subr.mxu0 0.0
    %146 = vmatpush1.msra.mxu0 0.0
    %147 = vmatprep.subr.mxu0 0.0
    %148 = vmatpush1.msra.mxu0 0.0
    %149 = vmatprep.subr.mxu0 0.0
    %150 = vmatpush1.msra.mxu0 0.0
    %151 = vmatprep.subr.mxu0 0.0
    %152 = vmatpush1.msra.mxu0 0.0
    %153 = vmatprep.subr.mxu0 0.0
    %154 = vmatpush1.msra.mxu0 0.0
    %155 = vmatprep.subr.mxu0 0.0
    %156 = vmatpush1.msra.mxu0 0.0
    %157 = vmatprep.subr.mxu0 0.0
    %158 = vmatpush1.msra.mxu0 0.0
    %159 = vmatprep.subr.mxu0 0.0
    %160 = vmatpush1.msra.mxu0 0.0
    %161 = vmatprep.subr.mxu0 0.0
    %162 = vmatpush1.msra.mxu0 0.0
    %163 = vmatprep.subr.mxu0 0.0
    %164 = vmatpush1.msra.mxu0 0.0
    %165 = vmatprep.subr.mxu0 0.0
    %166 = vmatpush1.msra.mxu0 0.0
    %167 = vmatprep.subr.mxu0 0.0
    %168 = vmatpush1.msra.mxu0 0.0
    %169 = vmatprep.subr.mxu0 0.0
    %170 = vmatpush1.msra.mxu0 0.0
    %171 = vmatprep.subr.mxu0 0.0
    %172 = vmatpush1.msra.mxu0 0.0
    %173 = vmatprep.mubr.f32.mxu0 0.0
    %174 = vmatmul.mubr.f32.gmra.mrb[0].mxu0 %v104
    %v175 = vpop.f32.mrb[0].mxu0
    %v176 = vadd.f32 0.0, %v175
    %v177 = vpop.f32.mrb[0].mxu0
    %v178 = vadd.f32 0.0, %v177
    %179 = vmatprep.mubr.f32.mxu0 0.0
    %180 = vmatmul.mubr.f32.gmra.mrb[0].mxu0 %v107
    %v181 = vpop.f32.mrb[0].mxu0
    %v182 = vadd.f32 0.0, %v181
    %v183 = vpop.f32.mrb[0].mxu0
    %v184 = vadd.f32 0.0, %v183
    %185 = vdwg.mxu0
    %186 = vmatprep.subr.mxu0 0.0
    %187 = vmatpush1.msra.mxu0 %v92
    %188 = vmatprep.subr.mxu0 0.0
    %189 = vmatpush1.msra.mxu0 %v95
    %190 = vmatprep.subr.mxu0 0.0
    %191 = vmatpush1.msra.mxu0 %v98
    %192 = vmatprep.subr.mxu0 0.0
    %193 = vmatpush1.msra.mxu0 %v101
    %194 = vmatprep.subr.mxu0 0.0
    %195 = vmatpush1.msra.mxu0 0.0
    %196 = vmatprep.subr.mxu0 0.0
    %197 = vmatpush1.msra.mxu0 0.0
    %198 = vmatprep.subr.mxu0 0.0
    %199 = vmatpush1.msra.mxu0 0.0
    %200 = vmatprep.subr.mxu0 0.0
    %201 = vmatpush1.msra.mxu0 0.0
    %202 = vmatprep.subr.mxu0 0.0
    %203 = vmatpush1.msra.mxu0 0.0
    %204 = vmatprep.subr.mxu0 0.0
    %205 = vmatpush1.msra.mxu0 0.0
    %206 = vmatprep.subr.mxu0 0.0
    %207 = vmatpush1.msra.mxu0 0.0
    %208 = vmatprep.subr.mxu0 0.0
    %209 = vmatpush1.msra.mxu0 0.0
    %210 = vmatprep.subr.mxu0 0.0
    %211 = vmatpush1.msra.mxu0 0.0
    %212 = vmatprep.subr.mxu0 0.0
    %213 = vmatpush1.msra.mxu0 0.0
    %214 = vmatprep.subr.mxu0 0.0
    %215 = vmatpush1.msra.mxu0 0.0
    %216 = vmatprep.subr.mxu0 0.0
    %217 = vmatpush1.msra.mxu0 0.0
    %218 = vmatprep.subr.mxu0 0.0
    %219 = vmatpush1.msra.mxu0 0.0
    %220 = vmatprep.subr.mxu0 0.0
    %221 = vmatpush1.msra.mxu0 0.0
    %222 = vmatprep.subr.mxu0 0.0
    %223 = vmatpush1.msra.mxu0 0.0
    %224 = vmatprep.subr.mxu0 0.0
    %225 = vmatpush1.msra.mxu0 0.0
    %226 = vmatprep.subr.mxu0 0.0
    %227 = vmatpush1.msra.mxu0 0.0
    %228 = vmatprep.subr.mxu0 0.0
    %229 = vmatpush1.msra.mxu0 0.0
    %230 = vmatprep.subr.mxu0 0.0
    %231 = vmatpush1.msra.mxu0 0.0
    %232 = vmatprep.subr.mxu0 0.0
    %233 = vmatpush1.msra.mxu0 0.0
    %234 = vmatprep.subr.mxu0 0.0
    %235 = vmatpush1.msra.mxu0 0.0
    %236 = vmatprep.subr.mxu0 0.0
    %237 = vmatpush1.msra.mxu0 0.0
    %238 = vmatprep.subr.mxu0 0.0
    %239 = vmatpush1.msra.mxu0 0.0
    %240 = vmatprep.subr.mxu0 0.0
    %241 = vmatpush1.msra.mxu0 0.0
    %242 = vmatprep.subr.mxu0 0.0
    %243 = vmatpush1.msra.mxu0 0.0
    %244 = vmatprep.subr.mxu0 0.0
    %245 = vmatpush1.msra.mxu0 0.0
    %246 = vmatprep.subr.mxu0 0.0
    %247 = vmatpush1.msra.mxu0 0.0
    %248 = vmatprep.subr.mxu0 0.0
    %249 = vmatpush1.msra.mxu0 0.0
    %250 = vmatprep.mubr.f32.mxu0 0.0
    %251 = vmatmul.mubr.f32.gmra.mrb[0].mxu0 %v104
    %v252 = vpop.f32.mrb[0].mxu0
    %v253 = vadd.f32 0.0, %v252
    %v254 = vpop.f32.mrb[0].mxu0
    %255 = vmatprep.mubr.f32.mxu0 0.0
    %256 = vmatmul.mubr.f32.gmra.mrb[0].mxu0 %v107
    %v257 = vpop.f32.mrb[0].mxu0
    %v258 = vadd.f32 0.0, %v257
    %v259 = vpop.f32.mrb[0].mxu0
    %260 = vdwg.mxu0
    %261 = vxpose.xlu0.b32.start [1/16] %v253, 128
    %262 = vxpose.xlu0.b32.cont [2/16] %v258, 128
    %263 = vxpose.xlu0.b32.cont [3/16] 0.0, 128
    %264 = vxpose.xlu0.b32.cont [4/16] 0.0, 128
    %265 = vxpose.xlu0.b32.cont [5/16] 0.0, 128
    %266 = vxpose.xlu0.b32.cont [6/16] 0.0, 128
    %267 = vxpose.xlu0.b32.cont [7/16] 0.0, 128
    %268 = vxpose.xlu0.b32.cont [8/16] 0.0, 128
    %269 = vxpose.xlu0.b32.cont [9/16] 0.0, 128
    %270 = vxpose.xlu0.b32.cont [10/16] 0.0, 128
    %271 = vxpose.xlu0.b32.cont [11/16] 0.0, 128
    %272 = vxpose.xlu0.b32.cont [12/16] 0.0, 128
    %273 = vxpose.xlu0.b32.cont [13/16] 0.0, 128
    %274 = vxpose.xlu0.b32.cont [14/16] 0.0, 128
    %275 = vxpose.xlu0.b32.cont [15/16] 0.0, 128
    %276 = vxpose.xlu0.b32.end [16/16] 0.0, 128
    %v277 = vpop.trf.xlu0
    %v278 = vpop.trf.xlu0
    %v279 = vpop.trf.xlu0
    %v280 = vpop.trf.xlu0
    %v281 = vpop.trf.xlu0
    %v282 = vpop.trf.xlu0
    %v283 = vpop.trf.xlu0
    %v284 = vpop.trf.xlu0
    %v285 = vpop.trf.xlu0
    %v286 = vpop.trf.xlu0
    %v287 = vpop.trf.xlu0
    %v288 = vpop.trf.xlu0
    %v289 = vpop.trf.xlu0
    %v290 = vpop.trf.xlu0
    %v291 = vpop.trf.xlu0
    %v292 = vpop.trf.xlu0
    %v293 = vld [vmem:[#allocation5] sm:$0xff]
    %v294 = vld [vmem:[%s4] sm:$0xff]
    %v295 = vmul.f32 %v293, %v294
    %v296 = vsel %vm102, %v295, 0.0
    %297 = vadd.xlane.f32.xlu0 %v296
    %v298 = vpop.xlane.xlu0 %297
    %v299 = vadd.f32 %v277, %v298
    %vm300 = vcmp.gt.f32.partialorder %v299, 0.0
    %v301 = vmul.f32 %v299, 0.2
    %v302 = vsel %vm300, %v299, %v301
    %v303 = vld [vmem:[#allocation7] sm:$0xff]
    %vm304 = vcmp.gt.f32.partialorder %v303, 0.0
    %v305 = vsel %vm304, %v302, -3.4028235e+38
    %vm306 = vcmask 130048
    %v307 = vsel %vm306, %v305, -inf
    %308 = vmax.xlane.f32.xlu0 %v307
    %v309 = vpop.xlane.xlu0 %308
    %v310 = vsub.f32 %v305, %v309
    %v311 = vmul.f32 %v310, 1.442695
    %v312 = vpow.pop %v311
    %v313 = vsel %vm306, %v312, 0.0
    %314 = vadd.xlane.f32.xlu0 %v313
    %v315 = vpop.xlane.xlu0 %314
    %v316 = vrcp.pop %v315
    %v317 = vmul.f32 %v312, %v316
    %v319 = vsel %vm306, %v317, 0
    %321 = vmatprep.subr.mxu0 %v178
    %322 = vmatpush1.msra.mxu0 %v176
    %323 = vmatprep.subr.mxu0 %v184
    %324 = vmatpush1.msra.mxu0 %v182
    %325 = vmatprep.subr.mxu0 0.0
    %326 = vmatpush1.msra.mxu0 0.0
    %327 = vmatprep.subr.mxu0 0.0
    %328 = vmatpush1.msra.mxu0 0.0
    %329 = vmatprep.subr.mxu0 0.0
    %330 = vmatpush1.msra.mxu0 0.0
    %331 = vmatprep.subr.mxu0 0.0
    %332 = vmatpush1.msra.mxu0 0.0
    %333 = vmatprep.subr.mxu0 0.0
    %334 = vmatpush1.msra.mxu0 0.0
    %335 = vmatprep.subr.mxu0 0.0
    %336 = vmatpush1.msra.mxu0 0.0
    %337 = vmatprep.subr.mxu0 0.0
    %338 = vmatpush1.msra.mxu0 0.0
    %339 = vmatprep.subr.mxu0 0.0
    %340 = vmatpush1.msra.mxu0 0.0
    %341 = vmatprep.subr.mxu0 0.0
    %342 = vmatpush1.msra.mxu0 0.0
    %343 = vmatprep.subr.mxu0 0.0
    %344 = vmatpush1.msra.mxu0 0.0
    %345 = vmatprep.subr.mxu0 0.0
    %346 = vmatpush1.msra.mxu0 0.0
    %347 = vmatprep.subr.mxu0 0.0
    %348 = vmatpush1.msra.mxu0 0.0
    %349 = vmatprep.subr.mxu0 0.0
    %350 = vmatpush1.msra.mxu0 0.0
    %351 = vmatprep.subr.mxu0 0.0
    %352 = vmatpush1.msra.mxu0 0.0
    %353 = vmatprep.subr.mxu0 0.0
    %354 = vmatpush1.msra.mxu0 0.0
    %355 = vmatprep.subr.mxu0 0.0
    %356 = vmatpush1.msra.mxu0 0.0
    %357 = vmatprep.subr.mxu0 0.0
    %358 = vmatpush1.msra.mxu0 0.0
    %359 = vmatprep.subr.mxu0 0.0
    %360 = vmatpush1.msra.mxu0 0.0
    %361 = vmatprep.subr.mxu0 0.0
    %362 = vmatpush1.msra.mxu0 0.0
    %363 = vmatprep.subr.mxu0 0.0
    %364 = vmatpush1.msra.mxu0 0.0
    %365 = vmatprep.subr.mxu0 0.0
    %366 = vmatpush1.msra.mxu0 0.0
    %367 = vmatprep.subr.mxu0 0.0
    %368 = vmatpush1.msra.mxu0 0.0
    %369 = vmatprep.subr.mxu0 0.0
    %370 = vmatpush1.msra.mxu0 0.0
    %371 = vmatprep.subr.mxu0 0.0
    %372 = vmatpush1.msra.mxu0 0.0
    %373 = vmatprep.subr.mxu0 0.0
    %374 = vmatpush1.msra.mxu0 0.0
    %375 = vmatprep.subr.mxu0 0.0
    %376 = vmatpush1.msra.mxu0 0.0
    %377 = vmatprep.subr.mxu0 0.0
    %378 = vmatpush1.msra.mxu0 0.0
    %379 = vmatprep.subr.mxu0 0.0
    %380 = vmatpush1.msra.mxu0 0.0
    %381 = vmatprep.subr.mxu0 0.0
    %382 = vmatpush1.msra.mxu0 0.0
    %383 = vmatprep.subr.mxu0 0.0
    %384 = vmatpush1.msra.mxu0 0.0
    %385 = vmatprep.mubr.f32.mxu0 0.0
    %386 = vmatmul.mubr.f32.gmra.mrb[0].mxu0 %v319
    %v387 = vpop.f32.mrb[0].mxu0
    %v388 = vadd.f32 0.0, %v387
    %v389 = vpop.f32.mrb[0].mxu0
    %v390 = vadd.f32 0.0, %v389
    %391 = vdwg.mxu0
    %v392 = vld [vmem:[#allocation10] sm:$0xff]
    %v393 = vld [vmem:[#allocation10 + $0x8] sm:$0xff]
    %s394 = scalar_lea.vmem [#allocation10], 16
    %v395 = vld [vmem:[%s394] ss:$8 sm:$0x3]
    %v396 = vmul.f32 %v388, %v392
    %v397 = vmul.f32 %v390, %v393
    %v398 = vrot.slane %v396, 4
    %v399 = vadd.f32 %v396, %v398
    %v400 = vrot.slane %v399, 2
    %v401 = vadd.f32 %v399, %v400
    %v402 = vrot.slane %v401, 1
    %v403 = vadd.f32 %v401, %v402
    %v404 = vrot.slane %v397, 4
    %v405 = vadd.f32 %v397, %v404
    %v406 = vrot.slane %v405, 2
    %v407 = vadd.f32 %v405, %v406
    %v408 = vrot.slane %v407, 1
    %v409 = vadd.f32 %v407, %v408
    %v411 = vlaneseq
    %v412 = vshrl.u32 %v411, 7
    %v413 = vsub.s32 0, %v412
    %v414 = vrot.slane %v395, %v413
    %v415 = vlaneseq
    %v416 = vshrl.u32 %v415, 7
    %v417 = vsub.s32 1, %v416
    %v418 = vrot.slane %v395, %v417
    %v421 = vadd.f32 %v403, %v414
    %v422 = vadd.f32 %v409, %v418
    %v423 = vmax.f32 %v421, 0.0
    %v424 = vmax.f32 %v422, 0.0
    %v427 = vcombine.low %v423, %v424
    %v429 = vunpack.c.l.s4 1966171168
    %v430 = vunpack.c.0.s8 %v429
    %v431 = vlaneseq
    %v432 = vshrl.u32 %v431, 7
    %v433 = vsub.s32 %v430, %v432
    %v434 = vrot.slane %v427, %v433
    %v436 = vunpack.c.l.s4 1966171168
    %v437 = vunpack.c.0.s8 %v436
    %v438 = vlaneseq
    %v439 = vshrl.u32 %v438, 7
    %v440 = vsub.s32 %v437, %v439
    %v441 = vrot.slane %v434, %v440
    %v443 = vlaneseq
    %vm444 = vcmp.ge.s32.totalorder %v443, 0
    %vm445 = vcmp.lt.s32.totalorder %v443, 256
    %vm446 = vmand %vm444, %vm445
    %447 = vst.msk [vmem:[#allocation11] sm:$0x3] %vm446, %v441
    // Predicated region
    $region46: #{tpu_custom_call.1} parent=1 // pred_check
      _
    $region47: #{tpu_custom_call.1} parent=1 // pred_check_branch
      %449 = sbr.rel (0) target = $region49
    $region48: #{tpu_custom_call.1} parent=1 // pred_region
      %s451 = ssub.s32 32, 32
      %452 = vsyncadd [#allocation4], %s451
      %s454 = sshll.u32 [#allocation11], 4
      %s455 = int_to_ptr.vmem [resolvable:$true] %s454
      %457 = dma.vmem_to_hbm [thread:$0]  %s455, 32, %s6, [#allocation4]
    $region49: #{tpu_custom_call.1} parent=1 // pred_fallthru
      _
    // Predicated region
    $region50: #{tpu_custom_call.1} parent=1 // pred_check
      _
    $region51: #{tpu_custom_call.1} parent=1 // pred_check_branch
      %459 = sbr.rel (0) target = $region53
    $region52: #{tpu_custom_call.1} parent=1 // pred_region
      %460 = dma.done [#allocation4], 32
    $region53: #{tpu_custom_call.1} parent=1 // pred_fallthru
      _
    %461 = vsyncpa [#allocation3], 1
    %462 = vsyncpa [#allocation6], 1
    %463 = vsyncpa [#allocation9], 1
    %464 = vsyncpa [#allocation4], 1

</llo_original>
